<compile_context>
chip_gen: v6e
topology: v6e:2x2x1
jax: 0.10.0
libtpu: 0.0.40
codegen_flags: <defaults>
</compile_context>

<pallas_src>
import numpy as np
import jax
import jax.numpy as jnp
from jax.experimental import pallas as pl
from jax.experimental.pallas import tpu as pltpu


def _cdiv(a, b):
    return (a + b - 1) // b


def _round_up(a, b):
    return _cdiv(a, b) * b


# ---------------------------------------------------------------------------
# Fused kernel: tiled denoise reduction + (finalize) MLP + mean CrossEntropy
# ---------------------------------------------------------------------------
def _make_fused_kernel(n_nodes, tile_n, nt_half, needs_mask):
    def kernel(pred_ref, tgt_ref, inv_ref,                 # node tiles, lane-dense
               x_ref, w1_ref, b1_ref, w2_ref, b2_ref,      # MLP (pinned blocks)
               onehot_ref,                                  # [G, E] one-hot labels
               den_ref, ce_ref,                             # (1,128) per-core outputs
               acc_ref):                                    # (1,1) VMEM scratch
        c = pl.program_id(0)    # 2-way core split (parallel axis)
        i = pl.program_id(1)    # node-tile index within this core's half

        @pl.when(i == 0)
        def _init():
            acc_ref[...] = jnp.zeros_like(acc_ref)

        # ---- per-tile denoise partial sum ---------------------------------
        # pred_noise - score_target == (pos_noise_pred - pos_target) * (1/sigma)
        diff = (pred_ref[...] - tgt_ref[...]) * inv_ref[...]          # [3, T]
        sq = diff * diff
        if needs_mask:
            # mask the ragged tail / fully-out-of-range duplicated tile
            start = (c * nt_half + i) * tile_n
            lane = jax.lax.broadcasted_iota(jnp.int32, (1, tile_n), 1)
            sq = jnp.where(start + lane < n_nodes, sq, 0.0)
        part = jnp.sum(jnp.sum(sq, axis=1, keepdims=True),            # lane reduce
                       axis=0, keepdims=True)                          # [1, 1]
        acc_ref[...] += part
        # TODO(synk): on v7x, if bundle profiling shows VALU/XLU co-binding,
        # switch to an [8,128] tree accumulator to drop the per-step reduce.

        @pl.when(i == nt_half - 1)
        def _finalize():
            # per-core raw partial sum, broadcast across the lane-dense block
            den_ref[...] = acc_ref[...] + jnp.zeros_like(den_ref)

            # ---- noise_pred MLP: Linear -> SiLU -> Linear, all f32 ---------
            h = jnp.dot(x_ref[...], w1_ref[...],
                        preferred_element_type=jnp.float32) + b1_ref[...]
            h = h * jax.nn.sigmoid(h)                                   # SiLU
            logits = jnp.dot(h, w2_ref[...],
                             preferred_element_type=jnp.float32) + b2_ref[...]

            # cross entropy with integer labels: lse(logits) - logits[label]
            m = jnp.max(logits, axis=-1, keepdims=True)                 # [G, 1]
            lse = m + jnp.log(jnp.sum(jnp.exp(logits - m),
                                      axis=-1, keepdims=True))
            picked = jnp.sum(onehot_ref[...] * logits,
                             axis=-1, keepdims=True)                    # [G, 1]
            ce = jnp.mean(lse - picked, axis=0, keepdims=True)          # [1, 1]
            ce_ref[...] = ce + jnp.zeros_like(ce_ref)

    return kernel


# ---------------------------------------------------------------------------
# Wrapper
# ---------------------------------------------------------------------------
def geossl_pdm_forward(params, molecule_repr, pos_noise_pred, pos_perturbed,
                       pos_target, node2graph, noise_level, num_graphs,
                       tile_n=65536):
    """pos_noise_pred / pos_perturbed / pos_target must be lane-dense [3, N]."""
    # pos_perturbed cancels algebraically; accepted only for interface parity.
    del pos_perturbed

    assert pos_noise_pred.shape[0] == 3 and pos_target.shape[0] == 3, (
        "pos arrays must be lane-dense [3, N] (producer contract; "
        "no wrapper transpose/pad)")
    N = pos_target.shape[1]
    G, E = molecule_repr.shape

    # tiny indexing glue (G-sized ops + one [N] gather); no transpose/pad passes
    inv_sigma_node = (1.0 / params["sigmas"][noise_level])[node2graph]   # [N]
    inv_sigma_node = inv_sigma_node.reshape(1, N).astype(jnp.float32)
    onehot = jax.nn.one_hot(noise_level, E, dtype=jnp.float32)           # [G, E]

    LANE = 128
    MAX_TILE = 131072   # 3 streams x 2 bufs x 8 sublanes x 4 B <= ~24 MiB (v7x-safe)
    tn = max(LANE, min(int(tile_n), MAX_TILE, _round_up(N, LANE)))
    tn = _round_up(tn, LANE)
    nt_total = _cdiv(N, tn)
    nt_half = _cdiv(nt_total, 2)            # 2-way core split
    needs_mask = (2 * nt_half * tn) != N

    def node_map(c, i):
        # clamp fully-out-of-range tiles (odd nt_total) to a valid block;
        # their contribution is zeroed by the in-kernel mask.
        return (0, jnp.minimum(c * nt_half + i, nt_total - 1))

    node3_spec = pl.BlockSpec((3, tn), node_map)
    node1_spec = pl.BlockSpec((1, tn), node_map)

    def pinned(shape):
        # Constant-index blocks are DMA'd once and stay resident.
        # (pl.Buffered(1) would save only a few KiB at these sizes.)
        return pl.BlockSpec(shape, lambda c, i: (0, 0))

    # VMEM budget: each node-stream block pads to 8 sublanes.
    vmem_needed = 3 * 2 * 8 * tn * 4 + (1 << 20)
    vmem_limit = int(min(max(vmem_needed + (8 << 20), 32 << 20), 48 << 20))

    cost = pl.CostEstimate(
        flops=8 * N + 4 * G * E * E,
        transcendentals=2 * G * E,
        bytes_accessed=(7 * N + 2 * E * E + 3 * G * E + 2 * E) * 4,
    )

    den_out, ce_out = pl.pallas_call(
        _make_fused_kernel(N, tn, nt_half, needs_mask),
        out_shape=(jax.ShapeDtypeStruct((1, 2 * LANE), jnp.float32),
                   jax.ShapeDtypeStruct((1, 2 * LANE), jnp.float32)),
        grid=(2, nt_half),
        in_specs=[
            node3_spec, node3_spec, node1_spec,
            pinned((G, E)), pinned((E, E)), pinned((1, E)),
            pinned((E, E)), pinned((1, E)), pinned((G, E)),
        ],
        out_specs=(pl.BlockSpec((1, LANE), lambda c, i: (0, c)),
                   pl.BlockSpec((1, LANE), lambda c, i: (0, c))),
        scratch_shapes=[pltpu.VMEM((1, 1), jnp.float32)],
        compiler_params=pltpu.CompilerParams(
            dimension_semantics=("parallel", "arbitrary"),
            vmem_limit_bytes=vmem_limit),
        cost_estimate=cost,
    )(pos_noise_pred, pos_target, inv_sigma_node,
      molecule_repr, params["w1"], params["b1"], params["w2"], params["b2"],
      onehot)

    pos_denoise = (den_out[0, 0] + den_out[0, LANE]) / num_graphs
    loss_pred_noise = ce_out[0, 0]   # both cores compute the same CE; take core 0
    return pos_denoise, loss_pred_noise


def init_params(key, emb_dim, sigma_begin, sigma_end, num_noise_level):
    k1, k2, k3, k4 = jax.random.split(key, 4)
    scale = 1.0 / np.sqrt(emb_dim)
    sigmas = jnp.asarray(
        np.exp(np.linspace(np.log(sigma_begin), np.log(sigma_end), num_noise_level)),
        dtype=jnp.float32,
    )
    return {
        "sigmas": sigmas,
        "w1": jax.random.uniform(k1, (emb_dim, emb_dim), jnp.float32, -scale, scale),
        "b1": jax.random.uniform(k2, (1, emb_dim), jnp.float32, -scale, scale),
        "w2": jax.random.uniform(k3, (emb_dim, emb_dim), jnp.float32, -scale, scale),
        "b2": jax.random.uniform(k4, (1, emb_dim), jnp.float32, -scale, scale),
    }


# ---------------------------------------------------------------------------
# Pure-JAX reference of the torch forward (default noise_type branch)
# ---------------------------------------------------------------------------
def _reference_forward(params, molecule_repr, pred_3n, perturbed_3n, target_3n,
                       node2graph, noise_level, num_graphs):
    used = params["sigmas"][noise_level][node2graph]                  # [N]
    score_target = (target_3n - perturbed_3n) / used[None, :]
    pred_noise = (pred_3n - perturbed_3n) / used[None, :]
    per_node = jnp.sum((pred_noise - score_target) ** 2, axis=0)      # [N]
    pos_denoise = jnp.sum(per_node) / num_graphs                      # scatter_add + mean
    h = molecule_repr @ params["w1"] + params["b1"]
    h = h * jax.nn.sigmoid(h)
    logits = h @ params["w2"] + params["b2"]
    lse = jax.scipy.special.logsumexp(logits, axis=-1)
    picked = jnp.take_along_axis(logits, noise_level[:, None], axis=-1)[:, 0]
    return pos_denoise, jnp.mean(lse - picked)


if __name__ == "__main__":
    # small synthetic shapes consistent with the module's forward
    emb_dim = 32
    num_noise_level = 4
    sigma_begin, sigma_end = 10.0, 0.01
    num_graphs = 2
    nodes_per_graph = 250
    N = num_graphs * nodes_per_graph        # 500: exercises ragged-tile masking

    key = jax.random.PRNGKey(0)
    kp, k1, k2, k3, k4, k5 = jax.random.split(key, 6)

    params = init_params(kp, emb_dim, sigma_begin, sigma_end, num_noise_level)

    # producer contract: positions are emitted lane-dense as [3, N]
    pos_target = jax.random.normal(k1, (3, N), jnp.float32)
    pos_perturbed = pos_target + 0.1 * jax.random.normal(k2, (3, N), jnp.float32)
    pos_noise_pred = jax.random.normal(k3, (3, N), jnp.float32)
    molecule_repr = jax.random.normal(k4, (num_graphs, emb_dim), jnp.float32)

    # data.batch: node -> graph assignment
    node2graph = jnp.repeat(jnp.arange(num_graphs, dtype=jnp.int32), nodes_per_graph)
    # torch.randint noise level per graph (generated host-side, like the module)
    noise_level = jax.random.randint(k5, (num_graphs,), 0, num_noise_level, jnp.int32)
    # NOTE: edge2graph = node2graph[edge_index[0]] is computed but unused in the
    # torch forward, so it is omitted here.

    fwd = jax.jit(geossl_pdm_forward, static_argnames=("num_graphs", "tile_n"))

    ref_den, ref_ce = _reference_forward(
        params, molecule_repr, pos_noise_pred, pos_perturbed, pos_target,
        node2graph, noise_level, num_graphs)

    # run with a small tile (multi-step grid, ragged tail) and the default tile
    # (single tile, fully-masked duplicate tile on the second core slot)
    for tn in (128, 65536):
        pos_denoise, loss_pred_noise = fwd(
            params, molecule_repr, pos_noise_pred, pos_perturbed, pos_target,
            node2graph, noise_level, num_graphs, tile_n=tn)
        jax.block_until_ready((pos_denoise, loss_pred_noise))
        assert jnp.isfinite(pos_denoise) and jnp.isfinite(loss_pred_noise)
        np.testing.assert_allclose(np.asarray(pos_denoise), np.asarray(ref_den),
                                   rtol=1e-4)
        np.testing.assert_allclose(np.asarray(loss_pred_noise), np.asarray(ref_ce),
                                   rtol=1e-4)

    print("KERNEL_OK")
</pallas_src>

<mosaic_0001>
module attributes {stable_mosaic.version = 11 : i64} {
  func.func @kernel(%arg0: i32, %arg1: i32, %arg2: memref<3x128xf32, #tpu.memory_space<vmem>>, %arg3: memref<3x128xf32, #tpu.memory_space<vmem>>, %arg4: memref<1x128xf32, #tpu.memory_space<vmem>>, %arg5: memref<2x32xf32, #tpu.memory_space<vmem>>, %arg6: memref<32x32xf32, #tpu.memory_space<vmem>>, %arg7: memref<1x32xf32, #tpu.memory_space<vmem>>, %arg8: memref<32x32xf32, #tpu.memory_space<vmem>>, %arg9: memref<1x32xf32, #tpu.memory_space<vmem>>, %arg10: memref<2x32xf32, #tpu.memory_space<vmem>>, %arg11: memref<1x128xf32, #tpu.memory_space<vmem>>, %arg12: memref<1x128xf32, #tpu.memory_space<vmem>>, %arg13: memref<1x1xf32, #tpu.memory_space<vmem>>) attributes {dimension_semantics = [#tpu.dimension_semantics<parallel>, #tpu.dimension_semantics<arbitrary>], iteration_bounds = array<i64: 2, 2>, scalar_prefetch = 0 : i64, scratch_operands = 1 : i64, tpu.core_type = #tpu.core_type<tc>, window_params = [{transform_indices = @transform_0, window_bounds = array<i64: 3, 128>}, {transform_indices = @transform_1, window_bounds = array<i64: 3, 128>}, {transform_indices = @transform_2, window_bounds = array<i64: 1, 128>}, {pipeline_mode = #tpu.pipeline_mode<synchronous>, transform_indices = @transform_3, window_bounds = array<i64: 2, 32>}, {pipeline_mode = #tpu.pipeline_mode<synchronous>, transform_indices = @transform_4, window_bounds = array<i64: 32, 32>}, {pipeline_mode = #tpu.pipeline_mode<synchronous>, transform_indices = @transform_5, window_bounds = array<i64: 1, 32>}, {pipeline_mode = #tpu.pipeline_mode<synchronous>, transform_indices = @transform_6, window_bounds = array<i64: 32, 32>}, {pipeline_mode = #tpu.pipeline_mode<synchronous>, transform_indices = @transform_7, window_bounds = array<i64: 1, 32>}, {pipeline_mode = #tpu.pipeline_mode<synchronous>, transform_indices = @transform_8, window_bounds = array<i64: 2, 32>}, {transform_indices = @transform_9, window_bounds = array<i64: 1, 128>}, {transform_indices = @transform_10, window_bounds = array<i64: 1, 128>}]} {
    %c0_i32 = arith.constant 0 : i32
    %0 = arith.cmpi eq, %arg1, %c0_i32 : i32
    %1 = arith.extui %0 : i1 to i32
    %c0_i32_0 = arith.constant 0 : i32
    %2 = arith.cmpi ne, %1, %c0_i32_0 : i32
    scf.if %2 {
      %cst_13 = arith.constant 0.000000e+00 : f32
      %32 = vector.broadcast %cst_13 : f32 to vector<1x1xf32>
      %c0_14 = arith.constant 0 : index
      %c0_15 = arith.constant 0 : index
      %33 = vector.load %arg13[%c0_14, %c0_15] : memref<1x1xf32, #tpu.memory_space<vmem>>, vector<1x1xf32>
      tpu.vector_store %arg13[%c0_14, %c0_15], %32 {strides = array<i32>} : memref<1x1xf32, #tpu.memory_space<vmem>>, vector<1x1xf32>,
    } else {
    }
    %c0 = arith.constant 0 : index
    %c0_1 = arith.constant 0 : index
    %3 = vector.load %arg2[%c0, %c0_1] : memref<3x128xf32, #tpu.memory_space<vmem>>, vector<3x128xf32>
    %c0_2 = arith.constant 0 : index
    %c0_3 = arith.constant 0 : index
    %4 = vector.load %arg3[%c0_2, %c0_3] : memref<3x128xf32, #tpu.memory_space<vmem>>, vector<3x128xf32>
    %5 = arith.subf %3, %4 : vector<3x128xf32>
    %c0_4 = arith.constant 0 : index
    %c0_5 = arith.constant 0 : index
    %6 = vector.load %arg4[%c0_4, %c0_5] : memref<1x128xf32, #tpu.memory_space<vmem>>, vector<1x128xf32>
    %7 = vector.broadcast %6 : vector<1x128xf32> to vector<3x128xf32>
    %8 = arith.mulf %5, %7 : vector<3x128xf32>
    %9 = arith.mulf %8, %8 : vector<3x128xf32>
    %c2_i32 = arith.constant 2 : i32
    %10 = arith.muli %arg0, %c2_i32 : i32
    %11 = arith.addi %10, %arg1 : i32
    %c128_i32 = arith.constant 128 : i32
    %12 = arith.muli %11, %c128_i32 : i32
    %13 = tpu.iota {dimensions = array<i32: 1>} : vector<1x128xi32>
    %14 = vector.broadcast %12 : i32 to vector<1x128xi32>
    %15 = arith.addi %14, %13 : vector<1x128xi32>
    %c500_i32 = arith.constant 500 : i32
    %16 = vector.broadcast %c500_i32 : i32 to vector<1x128xi32>
    %17 = arith.cmpi slt, %15, %16 : vector<1x128xi32>
    %cst = arith.constant 0.000000e+00 : f32
    %18 = vector.shape_cast %17 : vector<1x128xi1> to vector<1x128xi1>
    %19 = vector.broadcast %18 : vector<1x128xi1> to vector<3x128xi1>
    %20 = vector.broadcast %cst : f32 to vector<3x128xf32>
    %21 = arith.select %19, %9, %20 : vector<3x128xi1>, vector<3x128xf32>
    %cst_6 = arith.constant dense<0.000000e+00> : vector<3xf32>
    %22 = vector.multi_reduction <add>, %21, %cst_6 [1] : vector<3x128xf32> to vector<3xf32>
    %23 = vector.shape_cast %22 : vector<3xf32> to vector<3x1xf32>
    %cst_7 = arith.constant dense<0.000000e+00> : vector<1xf32>
    %24 = vector.multi_reduction <add>, %23, %cst_7 [0] : vector<3x1xf32> to vector<1xf32>
    %25 = vector.shape_cast %24 : vector<1xf32> to vector<1x1xf32>
    %c0_8 = arith.constant 0 : index
    %c0_9 = arith.constant 0 : index
    %26 = vector.load %arg13[%c0_8, %c0_9] : memref<1x1xf32, #tpu.memory_space<vmem>>, vector<1x1xf32>
    %27 = arith.addf %26, %25 : vector<1x1xf32>
    %c0_10 = arith.constant 0 : index
    %c0_11 = arith.constant 0 : index
    %28 = vector.load %arg13[%c0_10, %c0_11] : memref<1x1xf32, #tpu.memory_space<vmem>>, vector<1x1xf32>
    tpu.vector_store %arg13[%c0_10, %c0_11], %27 {strides = array<i32>} : memref<1x1xf32, #tpu.memory_space<vmem>>, vector<1x1xf32>,
    %c1_i32 = arith.constant 1 : i32
    %29 = arith.cmpi eq, %arg1, %c1_i32 : i32
    %30 = arith.extui %29 : i1 to i32
    %c0_i32_12 = arith.constant 0 : i32
    %31 = arith.cmpi ne, %30, %c0_i32_12 : i32
    scf.if %31 {
      %c0_13 = arith.constant 0 : index
      %c0_14 = arith.constant 0 : index
      %32 = vector.load %arg13[%c0_13, %c0_14] : memref<1x1xf32, #tpu.memory_space<vmem>>, vector<1x1xf32>
      %cst_15 = arith.constant 0.000000e+00 : f32
      %33 = vector.broadcast %cst_15 : f32 to vector<1x128xf32>
      %34 = vector.broadcast %32 : vector<1x1xf32> to vector<1x128xf32>
      %35 = arith.addf %34, %33 : vector<1x128xf32>
      %c0_16 = arith.constant 0 : index
      %c0_17 = arith.constant 0 : index
      %36 = vector.load %arg11[%c0_16, %c0_17] : memref<1x128xf32, #tpu.memory_space<vmem>>, vector<1x128xf32>
      tpu.vector_store %arg11[%c0_16, %c0_17], %35 {strides = array<i32>} : memref<1x128xf32, #tpu.memory_space<vmem>>, vector<1x128xf32>,
      %c0_18 = arith.constant 0 : index
      %c0_19 = arith.constant 0 : index
      %37 = vector.load %arg5[%c0_18, %c0_19] : memref<2x32xf32, #tpu.memory_space<vmem>>, vector<2x32xf32>
      %c0_20 = arith.constant 0 : index
      %c0_21 = arith.constant 0 : index
      %38 = vector.load %arg6[%c0_20, %c0_21] : memref<32x32xf32, #tpu.memory_space<vmem>>, vector<32x32xf32>
      %cst_22 = arith.constant dense<0.000000e+00> : vector<2x32xf32>
      %39 = tpu.matmul %37, %38, %cst_22 {dimension_numbers = #tpu.dot_dimension_numbers<[1], [0], [0], [1], [0, 0, 1, 1], [], []>} : vector<2x32xf32>, vector<32x32xf32>, vector<2x32xf32> -> vector<2x32xf32>
      %c0_23 = arith.constant 0 : index
      %c0_24 = arith.constant 0 : index
      %40 = vector.load %arg7[%c0_23, %c0_24] : memref<1x32xf32, #tpu.memory_space<vmem>>, vector<1x32xf32>
      %41 = vector.broadcast %40 : vector<1x32xf32> to vector<2x32xf32>
      %42 = arith.addf %39, %41 : vector<2x32xf32>
      %43 = arith.negf %42 : vector<2x32xf32>
      %44 = math.exp %43 : vector<2x32xf32>
      %cst_25 = arith.constant 1.000000e+00 : f32
      %45 = vector.broadcast %cst_25 : f32 to vector<2x32xf32>
      %46 = arith.addf %45, %44 : vector<2x32xf32>
      %47 = arith.divf %45, %46 : vector<2x32xf32>
      %48 = arith.mulf %42, %47 : vector<2x32xf32>
      %c0_26 = arith.constant 0 : index
      %c0_27 = arith.constant 0 : index
      %49 = vector.load %arg8[%c0_26, %c0_27] : memref<32x32xf32, #tpu.memory_space<vmem>>, vector<32x32xf32>
      %cst_28 = arith.constant dense<0.000000e+00> : vector<2x32xf32>
      %50 = tpu.matmul %48, %49, %cst_28 {dimension_numbers = #tpu.dot_dimension_numbers<[1], [0], [0], [1], [0, 0, 1, 1], [], []>} : vector<2x32xf32>, vector<32x32xf32>, vector<2x32xf32> -> vector<2x32xf32>
      %c0_29 = arith.constant 0 : index
      %c0_30 = arith.constant 0 : index
      %51 = vector.load %arg9[%c0_29, %c0_30] : memref<1x32xf32, #tpu.memory_space<vmem>>, vector<1x32xf32>
      %52 = vector.broadcast %51 : vector<1x32xf32> to vector<2x32xf32>
      %53 = arith.addf %50, %52 : vector<2x32xf32>
      %cst_31 = arith.constant dense<0xFF800000> : vector<2xf32>
      %54 = vector.multi_reduction <maximumf>, %53, %cst_31 [1] : vector<2x32xf32> to vector<2xf32>
      %55 = vector.shape_cast %54 : vector<2xf32> to vector<2x1xf32>
      %56 = vector.broadcast %55 : vector<2x1xf32> to vector<2x32xf32>
      %57 = arith.subf %53, %56 : vector<2x32xf32>
      %58 = math.exp %57 : vector<2x32xf32>
      %cst_32 = arith.constant dense<0.000000e+00> : vector<2xf32>
      %59 = vector.multi_reduction <add>, %58, %cst_32 [1] : vector<2x32xf32> to vector<2xf32>
      %60 = vector.shape_cast %59 : vector<2xf32> to vector<2x1xf32>
      %61 = math.log %60 : vector<2x1xf32>
      %62 = arith.addf %55, %61 : vector<2x1xf32>
      %c0_33 = arith.constant 0 : index
      %c0_34 = arith.constant 0 : index
      %63 = vector.load %arg10[%c0_33, %c0_34] : memref<2x32xf32, #tpu.memory_space<vmem>>, vector<2x32xf32>
      %64 = arith.mulf %63, %53 : vector<2x32xf32>
      %cst_35 = arith.constant dense<0.000000e+00> : vector<2xf32>
      %65 = vector.multi_reduction <add>, %64, %cst_35 [1] : vector<2x32xf32> to vector<2xf32>
      %66 = vector.shape_cast %65 : vector<2xf32> to vector<2x1xf32>
      %67 = arith.subf %62, %66 : vector<2x1xf32>
      %cst_36 = arith.constant dense<0.000000e+00> : vector<1xf32>
      %68 = vector.multi_reduction <add>, %67, %cst_36 [0] : vector<2x1xf32> to vector<1xf32>
      %69 = vector.shape_cast %68 : vector<1xf32> to vector<1x1xf32>
      %cst_37 = arith.constant 2.000000e+00 : f32
      %70 = vector.broadcast %cst_37 : f32 to vector<1x1xf32>
      %71 = arith.divf %69, %70 : vector<1x1xf32>
      %cst_38 = arith.constant 0.000000e+00 : f32
      %72 = vector.broadcast %cst_38 : f32 to vector<1x128xf32>
      %73 = vector.broadcast %71 : vector<1x1xf32> to vector<1x128xf32>
      %74 = arith.addf %73, %72 : vector<1x128xf32>
      %c0_39 = arith.constant 0 : index
      %c0_40 = arith.constant 0 : index
      %75 = vector.load %arg12[%c0_39, %c0_40] : memref<1x128xf32, #tpu.memory_space<vmem>>, vector<1x128xf32>
      tpu.vector_store %arg12[%c0_39, %c0_40], %74 {strides = array<i32>} : memref<1x128xf32, #tpu.memory_space<vmem>>, vector<1x128xf32>,
    } else {
    }
    return
  }
  func.func @transform_0(%arg0: i32, %arg1: i32) -> (i32, i32) {
    %c2_i32 = arith.constant 2 : i32
    %0 = arith.muli %arg0, %c2_i32 : i32
    %1 = arith.addi %0, %arg1 : i32
    %c3_i32 = arith.constant 3 : i32
    %2 = arith.minsi %1, %c3_i32 : i32
    %c0_i32 = arith.constant 0 : i32
    %c0_i32_0 = arith.constant 0 : i32
    return %c0_i32, %2 : i32, i32
  }
  func.func @transform_1(%arg0: i32, %arg1: i32) -> (i32, i32) {
    %c2_i32 = arith.constant 2 : i32
    %0 = arith.muli %arg0, %c2_i32 : i32
    %1 = arith.addi %0, %arg1 : i32
    %c3_i32 = arith.constant 3 : i32
    %2 = arith.minsi %1, %c3_i32 : i32
    %c0_i32 = arith.constant 0 : i32
    %c0_i32_0 = arith.constant 0 : i32
    return %c0_i32, %2 : i32, i32
  }
  func.func @transform_2(%arg0: i32, %arg1: i32) -> (i32, i32) {
    %c2_i32 = arith.constant 2 : i32
    %0 = arith.muli %arg0, %c2_i32 : i32
    %1 = arith.addi %0, %arg1 : i32
    %c3_i32 = arith.constant 3 : i32
    %2 = arith.minsi %1, %c3_i32 : i32
    %c0_i32 = arith.constant 0 : i32
    %c0_i32_0 = arith.constant 0 : i32
    return %c0_i32, %2 : i32, i32
  }
  func.func @transform_3(%arg0: i32, %arg1: i32) -> (i32, i32) {
    %c0_i32 = arith.constant 0 : i32
    %c0_i32_0 = arith.constant 0 : i32
    %c0_i32_1 = arith.constant 0 : i32
    return %c0_i32, %c0_i32_0 : i32, i32
  }
  func.func @transform_4(%arg0: i32, %arg1: i32) -> (i32, i32) {
    %c0_i32 = arith.constant 0 : i32
    %c0_i32_0 = arith.constant 0 : i32
    %c0_i32_1 = arith.constant 0 : i32
    return %c0_i32, %c0_i32_0 : i32, i32
  }
  func.func @transform_5(%arg0: i32, %arg1: i32) -> (i32, i32) {
    %c0_i32 = arith.constant 0 : i32
    %c0_i32_0 = arith.constant 0 : i32
    %c0_i32_1 = arith.constant 0 : i32
    return %c0_i32, %c0_i32_0 : i32, i32
  }
  func.func @transform_6(%arg0: i32, %arg1: i32) -> (i32, i32) {
    %c0_i32 = arith.constant 0 : i32
    %c0_i32_0 = arith.constant 0 : i32
    %c0_i32_1 = arith.constant 0 : i32
    return %c0_i32, %c0_i32_0 : i32, i32
  }
  func.func @transform_7(%arg0: i32, %arg1: i32) -> (i32, i32) {
    %c0_i32 = arith.constant 0 : i32
    %c0_i32_0 = arith.constant 0 : i32
    %c0_i32_1 = arith.constant 0 : i32
    return %c0_i32, %c0_i32_0 : i32, i32
  }
  func.func @transform_8(%arg0: i32, %arg1: i32) -> (i32, i32) {
    %c0_i32 = arith.constant 0 : i32
    %c0_i32_0 = arith.constant 0 : i32
    %c0_i32_1 = arith.constant 0 : i32
    return %c0_i32, %c0_i32_0 : i32, i32
  }
  func.func @transform_9(%arg0: i32, %arg1: i32) -> (i32, i32) {
    %c0_i32 = arith.constant 0 : i32
    %c0_i32_0 = arith.constant 0 : i32
    return %c0_i32, %arg0 : i32, i32
  }
  func.func @transform_10(%arg0: i32, %arg1: i32) -> (i32, i32) {
    %c0_i32 = arith.constant 0 : i32
    %c0_i32_0 = arith.constant 0 : i32
    return %c0_i32, %arg0 : i32, i32
  }
}

</mosaic_0001>

<llo_original>
// kernel: geossl_pdm_forward.1
$region0: #{geossl_pdm_forward.1}
  #allocation0 [shape = 'u32[]', space=smem, size = 0x4, offset = 0x4, fixed_abs, tag = 'smem constant byte address 0x4 - core index']
  #allocation1 [shape = 'u32[144,128]{1,0:T(1,128)}', space=vmem, size = 0x12000, scoped, tag = 'internal scratch']
  #allocation2 [shape = 'f32[1,1]{1,0:T(1,128)}', space=vmem, size = 0x200, scoped, tag = 'scratch operand']
  %s0 = inlined_call_operand.vmem [shape: f32[3,500], index: 0, kind: input, shape index: {}]
  %s1 = inlined_call_operand.vmem [shape: f32[3,500], index: 1, kind: input, shape index: {}]
  %s2 = inlined_call_operand.vmem [shape: f32[1,500], index: 2, kind: input, shape index: {}]
  %s3 = inlined_call_operand.vmem [shape: f32[2,32], index: 3, kind: input, shape index: {}]
  %s4 = inlined_call_operand.vmem [shape: f32[32,32], index: 4, kind: input, shape index: {}]
  %s5 = inlined_call_operand.vmem [shape: f32[1,32], index: 5, kind: input, shape index: {}]
  %s6 = inlined_call_operand.vmem [shape: f32[32,32], index: 6, kind: input, shape index: {}]
  %s7 = inlined_call_operand.vmem [shape: f32[1,32], index: 7, kind: input, shape index: {}]
  %s8 = inlined_call_operand.vmem [shape: f32[2,32], index: 8, kind: input, shape index: {}]
  %s9 = inlined_call_operand.vmem [shape: f32[1,256], index: 9, kind: output, shape index: {0}]
  %s10 = inlined_call_operand.vmem [shape: f32[1,256], index: 10, kind: output, shape index: {1}]
  %11 = xla_tuple %s9, %s10
  %s12 = sld [smem:[#allocation0]]
  $region85: #{geossl_pdm_forward.1} parent=0
    _
  %s14 = ssub.s32 1, %s12
  %s15 = scalar_select 0, %s14, %s12
  loop: start=0, step=1, limit=6
  $region2: #{geossl_pdm_forward.1} parent=0 // loop_pre_header
    _
  $region3: #{geossl_pdm_forward.1} parent=0 // loop_header
    %s17 = sphi 0, %s21
    %p18 = scmp.ge.s32.totalorder %s17, 6
    %s24 = sphi 0, %s36
    %s25 = sphi 0, %s32
    %s26 = sphi 0, %s24
    %s27 = sphi 0, %s25
    %s28 = sphi 0, %s26
    %s29 = sphi 0, %s27
    %s47 = sphi 0, %s49
    %s50 = sphi 0, %s47
    %s51 = sphi 0, %s50
    %s67 = sphi 0, %s51
    %s81 = sphi 0, %s83
    %s84 = sphi 0, %s81
    %s85 = sphi 0, %s84
    %s101 = sphi 0, %s85
    %s115 = sphi 0, %s117
    %s118 = sphi 0, %s115
    %s119 = sphi 0, %s118
    %s135 = sphi 0, %s119
    %s139 = sphi 0, %s139
    %s141 = sphi 0, %s139
    %s142 = sphi 0, %s141
    %s156 = sphi 0, %s142
    %s160 = sphi 0, %s160
    %s162 = sphi 0, %s160
    %s163 = sphi 0, %s162
    %s177 = sphi 0, %s163
    %s181 = sphi 0, %s181
    %s183 = sphi 0, %s181
    %s184 = sphi 0, %s183
    %s198 = sphi 0, %s184
    %s202 = sphi 0, %s202
    %s204 = sphi 0, %s202
    %s205 = sphi 0, %s204
    %s219 = sphi 0, %s205
    %s223 = sphi 0, %s223
    %s225 = sphi 0, %s223
    %s226 = sphi 0, %s225
    %s240 = sphi 0, %s226
    %s244 = sphi 0, %s244
    %s246 = sphi 0, %s244
    %s247 = sphi 0, %s246
    %s261 = sphi 0, %s247
    %s267 = sphi 0, %s269
    %s270 = sphi 0, %s267
    %s271 = sphi 0, %s270
    %s287 = sphi 0, %s271
    %s293 = sphi 0, %s295
    %s296 = sphi 0, %s293
    %s297 = sphi 0, %s296
    %s313 = sphi 0, %s297
  $region4: #{geossl_pdm_forward.1} parent=0 // loop_header_branch
    %20 = sbr.rel (%p18) target = $region8
  $region5: #{geossl_pdm_forward.1} parent=0 // loop_body
    %s22 = ssub.s32 %s17, 1
    %s23 = ssub.s32 %s17, 2
    %s30 = sadd.s32 1, %s25
    %p31 = scmp.ge.s32.totalorder %s30, 2
    %s32 = scalar_select %p31, 0, %s30
    %s33 = sadd.s32 1, %s24
    %s34 = scalar_select %p31, %s33, %s24
    %p35 = scmp.ge.s32.totalorder %s34, 2
    %s36 = scalar_select %p35, 0, %s34
    %s37 = smul.u32 %s24, 2
    %s38 = sadd.s32 %s37, %s25
    %p39 = scmp.lt.s32.totalorder %s38, 3
    %s40 = scalar_select %p39, %s38, 3
    %s41 = smul.u32 %s36, 2
    %s42 = sadd.s32 %s41, %s32
    %p43 = scmp.lt.s32.totalorder %s42, 3
    %s44 = scalar_select %p43, %s42, 3
    %s45 = ssub.s32 %s40, %s44
    %p46 = scmp.eq.s32.totalorder %s45, 0
    %s48 = sadd.s32 %s47, 1
    %s49 = scalar_select %p46, %s47, %s48
    %p52 = pneg %p46
    %p53 = scmp.eq.s32.totalorder %s17, 3
    %p54 = por %p52, %p53
    %p55 = scmp.ne.s32.totalorder %s47, %s50
    %p56 = scmp.eq.s32.totalorder %s17, 0
    %p57 = por %p55, %p56
    %p58 = scmp.ne.s32.totalorder %s47, %s50
    %p59 = scmp.eq.s32.totalorder %s22, 3
    %p60 = por %p58, %p59
    %p61 = scmp.ne.s32.totalorder %s50, %s51
    %p62 = scmp.eq.s32.totalorder %s22, 0
    %p63 = por %p61, %p62
    %p64 = scmp.ne.s32.totalorder %s50, %s51
    %p65 = scmp.eq.s32.totalorder %s23, 3
    %p66 = por %p64, %p65
    %p68 = scmp.ne.s32.totalorder %s51, %s67
    %p69 = scmp.eq.s32.totalorder %s23, 0
    %p70 = por %p68, %p69
    %s71 = smul.u32 %s24, 2
    %s72 = sadd.s32 %s71, %s25
    %p73 = scmp.lt.s32.totalorder %s72, 3
    %s74 = scalar_select %p73, %s72, 3
    %s75 = smul.u32 %s36, 2
    %s76 = sadd.s32 %s75, %s32
    %p77 = scmp.lt.s32.totalorder %s76, 3
    %s78 = scalar_select %p77, %s76, 3
    %s79 = ssub.s32 %s74, %s78
    %p80 = scmp.eq.s32.totalorder %s79, 0
    %s82 = sadd.s32 %s81, 1
    %s83 = scalar_select %p80, %s81, %s82
    %p86 = pneg %p80
    %p87 = scmp.eq.s32.totalorder %s17, 3
    %p88 = por %p86, %p87
    %p89 = scmp.ne.s32.totalorder %s81, %s84
    %p90 = scmp.eq.s32.totalorder %s17, 0
    %p91 = por %p89, %p90
    %p92 = scmp.ne.s32.totalorder %s81, %s84
    %p93 = scmp.eq.s32.totalorder %s22, 3
    %p94 = por %p92, %p93
    %p95 = scmp.ne.s32.totalorder %s84, %s85
    %p96 = scmp.eq.s32.totalorder %s22, 0
    %p97 = por %p95, %p96
    %p98 = scmp.ne.s32.totalorder %s84, %s85
    %p99 = scmp.eq.s32.totalorder %s23, 3
    %p100 = por %p98, %p99
    %p102 = scmp.ne.s32.totalorder %s85, %s101
    %p103 = scmp.eq.s32.totalorder %s23, 0
    %p104 = por %p102, %p103
    %s105 = smul.u32 %s24, 2
    %s106 = sadd.s32 %s105, %s25
    %p107 = scmp.lt.s32.totalorder %s106, 3
    %s108 = scalar_select %p107, %s106, 3
    %s109 = smul.u32 %s36, 2
    %s110 = sadd.s32 %s109, %s32
    %p111 = scmp.lt.s32.totalorder %s110, 3
    %s112 = scalar_select %p111, %s110, 3
    %s113 = ssub.s32 %s108, %s112
    %p114 = scmp.eq.s32.totalorder %s113, 0
    %s116 = sadd.s32 %s115, 1
    %s117 = scalar_select %p114, %s115, %s116
    %p120 = pneg %p114
    %p121 = scmp.eq.s32.totalorder %s17, 3
    %p122 = por %p120, %p121
    %p123 = scmp.ne.s32.totalorder %s115, %s118
    %p124 = scmp.eq.s32.totalorder %s17, 0
    %p125 = por %p123, %p124
    %p126 = scmp.ne.s32.totalorder %s115, %s118
    %p127 = scmp.eq.s32.totalorder %s22, 3
    %p128 = por %p126, %p127
    %p129 = scmp.ne.s32.totalorder %s118, %s119
    %p130 = scmp.eq.s32.totalorder %s22, 0
    %p131 = por %p129, %p130
    %p132 = scmp.ne.s32.totalorder %s118, %s119
    %p133 = scmp.eq.s32.totalorder %s23, 3
    %p134 = por %p132, %p133
    %p136 = scmp.ne.s32.totalorder %s119, %s135
    %p137 = scmp.eq.s32.totalorder %s23, 0
    %p138 = por %p136, %p137
    %s140 = sadd.s32 %s139, 1
    %p143 = scmp.eq.s32.totalorder %s17, 3
    %p144 = scmp.ne.s32.totalorder %s139, %s141
    %p145 = scmp.eq.s32.totalorder %s17, 0
    %p146 = por %p144, %p145
    %p147 = scmp.ne.s32.totalorder %s139, %s141
    %p148 = scmp.eq.s32.totalorder %s22, 3
    %p149 = por %p147, %p148
    %p150 = scmp.ne.s32.totalorder %s141, %s142
    %p151 = scmp.eq.s32.totalorder %s22, 0
    %p152 = por %p150, %p151
    %p153 = scmp.ne.s32.totalorder %s141, %s142
    %p154 = scmp.eq.s32.totalorder %s23, 3
    %p155 = por %p153, %p154
    %p157 = scmp.ne.s32.totalorder %s142, %s156
    %p158 = scmp.eq.s32.totalorder %s23, 0
    %p159 = por %p157, %p158
    %s161 = sadd.s32 %s160, 1
    %p164 = scmp.eq.s32.totalorder %s17, 3
    %p165 = scmp.ne.s32.totalorder %s160, %s162
    %p166 = scmp.eq.s32.totalorder %s17, 0
    %p167 = por %p165, %p166
    %p168 = scmp.ne.s32.totalorder %s160, %s162
    %p169 = scmp.eq.s32.totalorder %s22, 3
    %p170 = por %p168, %p169
    %p171 = scmp.ne.s32.totalorder %s162, %s163
    %p172 = scmp.eq.s32.totalorder %s22, 0
    %p173 = por %p171, %p172
    %p174 = scmp.ne.s32.totalorder %s162, %s163
    %p175 = scmp.eq.s32.totalorder %s23, 3
    %p176 = por %p174, %p175
    %p178 = scmp.ne.s32.totalorder %s163, %s177
    %p179 = scmp.eq.s32.totalorder %s23, 0
    %p180 = por %p178, %p179
    %s182 = sadd.s32 %s181, 1
    %p185 = scmp.eq.s32.totalorder %s17, 3
    %p186 = scmp.ne.s32.totalorder %s181, %s183
    %p187 = scmp.eq.s32.totalorder %s17, 0
    %p188 = por %p186, %p187
    %p189 = scmp.ne.s32.totalorder %s181, %s183
    %p190 = scmp.eq.s32.totalorder %s22, 3
    %p191 = por %p189, %p190
    %p192 = scmp.ne.s32.totalorder %s183, %s184
    %p193 = scmp.eq.s32.totalorder %s22, 0
    %p194 = por %p192, %p193
    %p195 = scmp.ne.s32.totalorder %s183, %s184
    %p196 = scmp.eq.s32.totalorder %s23, 3
    %p197 = por %p195, %p196
    %p199 = scmp.ne.s32.totalorder %s184, %s198
    %p200 = scmp.eq.s32.totalorder %s23, 0
    %p201 = por %p199, %p200
    %s203 = sadd.s32 %s202, 1
    %p206 = scmp.eq.s32.totalorder %s17, 3
    %p207 = scmp.ne.s32.totalorder %s202, %s204
    %p208 = scmp.eq.s32.totalorder %s17, 0
    %p209 = por %p207, %p208
    %p210 = scmp.ne.s32.totalorder %s202, %s204
    %p211 = scmp.eq.s32.totalorder %s22, 3
    %p212 = por %p210, %p211
    %p213 = scmp.ne.s32.totalorder %s204, %s205
    %p214 = scmp.eq.s32.totalorder %s22, 0
    %p215 = por %p213, %p214
    %p216 = scmp.ne.s32.totalorder %s204, %s205
    %p217 = scmp.eq.s32.totalorder %s23, 3
    %p218 = por %p216, %p217
    %p220 = scmp.ne.s32.totalorder %s205, %s219
    %p221 = scmp.eq.s32.totalorder %s23, 0
    %p222 = por %p220, %p221
    %s224 = sadd.s32 %s223, 1
    %p227 = scmp.eq.s32.totalorder %s17, 3
    %p228 = scmp.ne.s32.totalorder %s223, %s225
    %p229 = scmp.eq.s32.totalorder %s17, 0
    %p230 = por %p228, %p229
    %p231 = scmp.ne.s32.totalorder %s223, %s225
    %p232 = scmp.eq.s32.totalorder %s22, 3
    %p233 = por %p231, %p232
    %p234 = scmp.ne.s32.totalorder %s225, %s226
    %p235 = scmp.eq.s32.totalorder %s22, 0
    %p236 = por %p234, %p235
    %p237 = scmp.ne.s32.totalorder %s225, %s226
    %p238 = scmp.eq.s32.totalorder %s23, 3
    %p239 = por %p237, %p238
    %p241 = scmp.ne.s32.totalorder %s226, %s240
    %p242 = scmp.eq.s32.totalorder %s23, 0
    %p243 = por %p241, %p242
    %s245 = sadd.s32 %s244, 1
    %p248 = scmp.eq.s32.totalorder %s17, 3
    %p249 = scmp.ne.s32.totalorder %s244, %s246
    %p250 = scmp.eq.s32.totalorder %s17, 0
    %p251 = por %p249, %p250
    %p252 = scmp.ne.s32.totalorder %s244, %s246
    %p253 = scmp.eq.s32.totalorder %s22, 3
    %p254 = por %p252, %p253
    %p255 = scmp.ne.s32.totalorder %s246, %s247
    %p256 = scmp.eq.s32.totalorder %s22, 0
    %p257 = por %p255, %p256
    %p258 = scmp.ne.s32.totalorder %s246, %s247
    %p259 = scmp.eq.s32.totalorder %s23, 3
    %p260 = por %p258, %p259
    %p262 = scmp.ne.s32.totalorder %s247, %s261
    %p263 = scmp.eq.s32.totalorder %s23, 0
    %p264 = por %p262, %p263
    %s265 = ssub.s32 %s24, %s36
    %p266 = scmp.eq.s32.totalorder %s265, 0
    %s268 = sadd.s32 %s267, 1
    %s269 = scalar_select %p266, %s267, %s268
    %p272 = pneg %p266
    %p273 = scmp.eq.s32.totalorder %s17, 3
    %p274 = por %p272, %p273
    %p275 = scmp.ne.s32.totalorder %s267, %s270
    %p276 = scmp.eq.s32.totalorder %s17, 0
    %p277 = por %p275, %p276
    %p278 = scmp.ne.s32.totalorder %s267, %s270
    %p279 = scmp.eq.s32.totalorder %s22, 3
    %p280 = por %p278, %p279
    %p281 = scmp.ne.s32.totalorder %s270, %s271
    %p282 = scmp.eq.s32.totalorder %s22, 0
    %p283 = por %p281, %p282
    %p284 = scmp.ne.s32.totalorder %s270, %s271
    %p285 = scmp.eq.s32.totalorder %s23, 3
    %p286 = por %p284, %p285
    %p288 = scmp.ne.s32.totalorder %s271, %s287
    %p289 = scmp.eq.s32.totalorder %s23, 0
    %p290 = por %p288, %p289
    %s291 = ssub.s32 %s24, %s36
    %p292 = scmp.eq.s32.totalorder %s291, 0
    %s294 = sadd.s32 %s293, 1
    %s295 = scalar_select %p292, %s293, %s294
    %p298 = pneg %p292
    %p299 = scmp.eq.s32.totalorder %s17, 3
    %p300 = por %p298, %p299
    %p301 = scmp.ne.s32.totalorder %s293, %s296
    %p302 = scmp.eq.s32.totalorder %s17, 0
    %p303 = por %p301, %p302
    %p304 = scmp.ne.s32.totalorder %s293, %s296
    %p305 = scmp.eq.s32.totalorder %s22, 3
    %p306 = por %p304, %p305
    %p307 = scmp.ne.s32.totalorder %s296, %s297
    %p308 = scmp.eq.s32.totalorder %s22, 0
    %p309 = por %p307, %p308
    %p310 = scmp.ne.s32.totalorder %s296, %s297
    %p311 = scmp.eq.s32.totalorder %s23, 3
    %p312 = por %p310, %p311
    %p314 = scmp.ne.s32.totalorder %s297, %s313
    %p315 = scmp.eq.s32.totalorder %s23, 0
    %p316 = por %p314, %p315
    %p317 = scmp.le.s32.totalorder 1, %s17
    %p318 = scmp.lt.s32.totalorder %s17, 5
    %p319 = pnand %p317, %p318
    %p320 = pneg %p319
    // Predicated region
    $region9: #{geossl_pdm_forward.1} parent=5 // pred_check
      _
    $region10: #{geossl_pdm_forward.1} parent=5 // pred_check_branch
      %322 = sbr.rel (%p319) target = $region12
    $region11: #{geossl_pdm_forward.1} parent=5 // pred_region
      %s323 = ssub.s32 %s17, 1
      // Predicated region
      $region13: #{geossl_pdm_forward.1} parent=11 // pred_check
        %p324 = pneg %p152
      $region14: #{geossl_pdm_forward.1} parent=11 // pred_check_branch
        %326 = sbr.rel (%p324) target = $region16
      $region15: #{geossl_pdm_forward.1} parent=11 // pred_region
        _
      $region16: #{geossl_pdm_forward.1} parent=11 // pred_fallthru
        _
      // Predicated region
      $region17: #{geossl_pdm_forward.1} parent=11 // pred_check
        %p327 = pneg %p173
      $region18: #{geossl_pdm_forward.1} parent=11 // pred_check_branch
        %329 = sbr.rel (%p327) target = $region20
      $region19: #{geossl_pdm_forward.1} parent=11 // pred_region
        _
      $region20: #{geossl_pdm_forward.1} parent=11 // pred_fallthru
        _
      // Predicated region
      $region21: #{geossl_pdm_forward.1} parent=11 // pred_check
        %p330 = pneg %p194
      $region22: #{geossl_pdm_forward.1} parent=11 // pred_check_branch
        %332 = sbr.rel (%p330) target = $region24
      $region23: #{geossl_pdm_forward.1} parent=11 // pred_region
        _
      $region24: #{geossl_pdm_forward.1} parent=11 // pred_fallthru
        _
      // Predicated region
      $region25: #{geossl_pdm_forward.1} parent=11 // pred_check
        %p333 = pneg %p215
      $region26: #{geossl_pdm_forward.1} parent=11 // pred_check_branch
        %335 = sbr.rel (%p333) target = $region28
      $region27: #{geossl_pdm_forward.1} parent=11 // pred_region
        _
      $region28: #{geossl_pdm_forward.1} parent=11 // pred_fallthru
        _
      // Predicated region
      $region29: #{geossl_pdm_forward.1} parent=11 // pred_check
        %p336 = pneg %p236
      $region30: #{geossl_pdm_forward.1} parent=11 // pred_check_branch
        %338 = sbr.rel (%p336) target = $region32
      $region31: #{geossl_pdm_forward.1} parent=11 // pred_region
        _
      $region32: #{geossl_pdm_forward.1} parent=11 // pred_fallthru
        _
      // Predicated region
      $region33: #{geossl_pdm_forward.1} parent=11 // pred_check
        %p339 = pneg %p257
      $region34: #{geossl_pdm_forward.1} parent=11 // pred_check_branch
        %341 = sbr.rel (%p339) target = $region36
      $region35: #{geossl_pdm_forward.1} parent=11 // pred_region
        _
      $region36: #{geossl_pdm_forward.1} parent=11 // pred_fallthru
        _
    $region12: #{geossl_pdm_forward.1} parent=5 // pred_fallthru
      _
    %p342 = scmp.lt.s32.totalorder %s17, 4
    // Predicated region
    $region37: #{geossl_pdm_forward.1} parent=5 // pred_check
      %p343 = pneg %p342
    $region38: #{geossl_pdm_forward.1} parent=5 // pred_check_branch
      %345 = sbr.rel (%p343) target = $region40
    $region39: #{geossl_pdm_forward.1} parent=5 // pred_region
      // Predicated region
      $region41: #{geossl_pdm_forward.1} parent=39 // pred_check
        %p346 = pneg %p57
      $region42: #{geossl_pdm_forward.1} parent=39 // pred_check_branch
        %348 = sbr.rel (%p346) target = $region44
      $region43: #{geossl_pdm_forward.1} parent=39 // pred_region
        %s349 = smul.u32 %s24, 2
        %s350 = sadd.s32 %s349, %s25
        %p351 = scmp.lt.s32.totalorder %s350, 3
        %s352 = scalar_select %p351, %s350, 3
        %p353 = scmp.lt.s32.totalorder %s352, 3
        %s354 = scalar_select %p353, %s352, 3
        %s355 = smul.addr %s354, 4
        %s356 = scalar_lea.vmem %s0, %s355
        %s357 = smul.u32 %s24, 2
        %s358 = sadd.s32 %s357, %s25
        %p359 = scmp.lt.s32.totalorder %s358, 3
        %s360 = scalar_select %p359, %s358, 3
      $region44: #{geossl_pdm_forward.1} parent=39 // pred_fallthru
        _
      // Predicated region
      $region45: #{geossl_pdm_forward.1} parent=39 // pred_check
        %p361 = pneg %p91
      $region46: #{geossl_pdm_forward.1} parent=39 // pred_check_branch
        %363 = sbr.rel (%p361) target = $region48
      $region47: #{geossl_pdm_forward.1} parent=39 // pred_region
        %s364 = smul.u32 %s24, 2
        %s365 = sadd.s32 %s364, %s25
        %p366 = scmp.lt.s32.totalorder %s365, 3
        %s367 = scalar_select %p366, %s365, 3
        %p368 = scmp.lt.s32.totalorder %s367, 3
        %s369 = scalar_select %p368, %s367, 3
        %s370 = smul.addr %s369, 4
        %s371 = scalar_lea.vmem %s1, %s370
        %s372 = smul.u32 %s24, 2
        %s373 = sadd.s32 %s372, %s25
        %p374 = scmp.lt.s32.totalorder %s373, 3
        %s375 = scalar_select %p374, %s373, 3
      $region48: #{geossl_pdm_forward.1} parent=39 // pred_fallthru
        _
      // Predicated region
      $region49: #{geossl_pdm_forward.1} parent=39 // pred_check
        %p376 = pneg %p125
      $region50: #{geossl_pdm_forward.1} parent=39 // pred_check_branch
        %378 = sbr.rel (%p376) target = $region52
      $region51: #{geossl_pdm_forward.1} parent=39 // pred_region
        %s379 = smul.u32 %s24, 2
        %s380 = sadd.s32 %s379, %s25
        %p381 = scmp.lt.s32.totalorder %s380, 3
        %s382 = scalar_select %p381, %s380, 3
        %p383 = scmp.lt.s32.totalorder %s382, 3
        %s384 = scalar_select %p383, %s382, 3
        %s385 = scalar_lea.vmem %s2, %s384
        %s386 = smul.u32 %s24, 2
        %s387 = sadd.s32 %s386, %s25
        %p388 = scmp.lt.s32.totalorder %s387, 3
        %s389 = scalar_select %p388, %s387, 3
      $region52: #{geossl_pdm_forward.1} parent=39 // pred_fallthru
        _
    $region40: #{geossl_pdm_forward.1} parent=5 // pred_fallthru
      _
    %p390 = scmp.le.s32.totalorder 1, %s17
    %p391 = scmp.lt.s32.totalorder %s17, 5
    %p392 = pnand %p390, %p391
    %p393 = pneg %p392
    // Predicated region
    $region53: #{geossl_pdm_forward.1} parent=5 // pred_check
      _
    $region54: #{geossl_pdm_forward.1} parent=5 // pred_check_branch
      %395 = sbr.rel (%p392) target = $region56
    $region55: #{geossl_pdm_forward.1} parent=5 // pred_region
      %s396 = ssub.s32 %s17, 1
      %s397 = smul.u32 %s26, 2
      %s398 = sadd.s32 %s397, %s27
      %p399 = scmp.lt.s32.totalorder %s398, 3
      %s400 = scalar_select %p399, %s398, 3
      %p401 = scmp.lt.s32.totalorder %s400, 3
      %s402 = scalar_select %p401, %s400, 3
      %s403 = smul.addr %s402, 4
      %s404 = scalar_lea.vmem %s0, %s403
      %p405 = pneg %p63
      %p406 = pneg %p60
      %s407 = smul.u32 %s26, 2
      %s408 = sadd.s32 %s407, %s27
      %p409 = scmp.lt.s32.totalorder %s408, 3
      %s410 = scalar_select %p409, %s408, 3
      %p411 = scmp.lt.s32.totalorder %s410, 3
      %s412 = scalar_select %p411, %s410, 3
      %s413 = smul.addr %s412, 4
      %s414 = scalar_lea.vmem %s1, %s413
      %p415 = pneg %p97
      %p416 = pneg %p94
      %s417 = smul.u32 %s26, 2
      %s418 = sadd.s32 %s417, %s27
      %p419 = scmp.lt.s32.totalorder %s418, 3
      %s420 = scalar_select %p419, %s418, 3
      %p421 = scmp.lt.s32.totalorder %s420, 3
      %s422 = scalar_select %p421, %s420, 3
      %s423 = scalar_lea.vmem %s2, %s422
      %p424 = pneg %p131
      %p425 = pneg %p128
      %p426 = pneg %p152
      %p427 = pneg %p149
      %p428 = pneg %p173
      %p429 = pneg %p170
      %p430 = pneg %p194
      %p431 = pneg %p191
      %p432 = pneg %p215
      %p433 = pneg %p212
      %p434 = pneg %p236
      %p435 = pneg %p233
      %p436 = pneg %p257
      %p437 = pneg %p254
      %p438 = pneg %p283
      %p439 = pneg %p280
      %p440 = scmp.lt.s32.totalorder %s26, 1
      %s441 = scalar_select %p440, %s26, 1
      %s442 = scalar_lea.vmem %s9, %s441
      %p443 = pneg %p309
      %p444 = pneg %p306
      %p445 = scmp.lt.s32.totalorder %s26, 1
      %s446 = scalar_select %p445, %s26, 1
      %s447 = scalar_lea.vmem %s10, %s446
      %s448 = smul.u32 %s26, 2
      %s449 = sadd.s32 %s448, %s27
      %p450 = scmp.lt.s32.totalorder %s449, 3
      %s451 = scalar_select %p450, %s449, 3
      %p452 = scmp.lt.s32.totalorder %s451, 3
      %s453 = scalar_select %p452, %s451, 3
      %s454 = smul.addr %s453, 4
      %s455 = scalar_lea.vmem %s0, %s454
      %s456 = smul.u32 %s26, 2
      %s457 = sadd.s32 %s456, %s27
      %p458 = scmp.lt.s32.totalorder %s457, 3
      %s459 = scalar_select %p458, %s457, 3
      %s460 = smul.u32 %s26, 2
      %s461 = sadd.s32 %s460, %s27
      %p462 = scmp.lt.s32.totalorder %s461, 3
      %s463 = scalar_select %p462, %s461, 3
      %p464 = scmp.lt.s32.totalorder %s463, 3
      %s465 = scalar_select %p464, %s463, 3
      %s466 = smul.addr %s465, 4
      %s467 = scalar_lea.vmem %s1, %s466
      %s468 = smul.u32 %s26, 2
      %s469 = sadd.s32 %s468, %s27
      %p470 = scmp.lt.s32.totalorder %s469, 3
      %s471 = scalar_select %p470, %s469, 3
      %s472 = smul.u32 %s26, 2
      %s473 = sadd.s32 %s472, %s27
      %p474 = scmp.lt.s32.totalorder %s473, 3
      %s475 = scalar_select %p474, %s473, 3
      %p476 = scmp.lt.s32.totalorder %s475, 3
      %s477 = scalar_select %p476, %s475, 3
      %s478 = scalar_lea.vmem %s2, %s477
      %s479 = smul.u32 %s26, 2
      %s480 = sadd.s32 %s479, %s27
      %p481 = scmp.lt.s32.totalorder %s480, 3
      %s482 = scalar_select %p481, %s480, 3
      %p483 = scmp.lt.s32.totalorder %s26, 1
      %s484 = scalar_select %p483, %s26, 1
      %s485 = scalar_lea.vmem %s9, %s484
      %p486 = scmp.lt.s32.totalorder %s26, 1
      %s487 = scalar_select %p486, %s26, 1
      %s488 = scalar_lea.vmem %s10, %s487
      %p489 = scmp.eq.s32.totalorder %s27, 0
      // Predicated region
      $region57: #{geossl_pdm_forward.1} parent=55 // pred_check
        %p490 = pneg %p489
      $region58: #{geossl_pdm_forward.1} parent=55 // pred_check_branch
        %492 = sbr.rel (%p490) target = $region60
      $region59: #{geossl_pdm_forward.1} parent=55 // pred_region
        %vm493 = vcmask 0
        %494 = vst.msk [vmem:[#allocation2] sm:$0x1] %vm493, 0.0
      $region60: #{geossl_pdm_forward.1} parent=55 // pred_fallthru
        _
      %v495 = vld [vmem:[%s455] sm:$0x7]
      %v496 = vld [vmem:[%s467] sm:$0x7]
      %v497 = vsub.f32 %v495, %v496
      %v498 = vld [vmem:[%s478] sm:$0x1]
      %v500 = vlaneseq
      %v501 = vshrl.u32 %v500, 7
      %v502 = vsub.s32 0, %v501
      %v503 = vrot.slane %v498, %v502
      %v505 = vmul.f32 %v497, %v503
      %v506 = vmul.f32 %v505, %v505
      %s507 = smul.u32 %s26, 2
      %s508 = sadd.s32 %s507, %s27
      %s509 = smul.u32 %s508, 128
      %v510 = vlaneseq
      %v511 = vand.u32 %v510, 127
      %v512 = vstv %s509
      %v513 = vadd.s32 %v512, %v511
      %vm514 = vcmp.lt.s32.totalorder %v513, 500
      %v515 = vsel %vm514, 1, 0
      %vm516 = vcmp.eq.s32.totalorder %v515, 1
      %v517 = vsel %vm516, %v506, 0.0
      %vm518 = vcmask 1042432
      %v519 = vsel %vm518, %v517, 0.0
      %520 = vadd.xlane.f32.xlu0 %v519
      %v521 = vpop.xlane.xlu0 %520
      %v522 = vsel %vm518, %v521, 0.0
      %v523 = vrot.slane %v522, 4
      %v524 = vadd.f32 %v522, %v523
      %v525 = vrot.slane %v524, 2
      %v526 = vadd.f32 %v524, %v525
      %v527 = vrot.slane %v526, 1
      %v528 = vadd.f32 %v526, %v527
      %v529 = vld [vmem:[#allocation2] sm:$0x1]
      %v530 = vadd.f32 %v529, %v528
      %vm531 = vcmask 0
      %532 = vst.msk [vmem:[#allocation2] sm:$0x1] %vm531, %v530
      %p533 = scmp.eq.s32.totalorder %s27, 1
      // Predicated region
      $region61: #{geossl_pdm_forward.1} parent=55 // pred_check
        %p534 = pneg %p533
      $region62: #{geossl_pdm_forward.1} parent=55 // pred_check_branch
        %536 = sbr.rel (%p534) target = $region64
      $region63: #{geossl_pdm_forward.1} parent=55 // pred_region
        %v537 = vld [vmem:[#allocation2] sm:$0x1]
        %539 = vset.pattern.permute.xlu0 0
        %540 = vperm.xlu0 %539, %v537
        %v541 = vpop.permute.xlu0 %540
        %v543 = vlaneseq
        %v544 = vshrl.u32 %v543, 7
        %v545 = vsub.s32 0, %v544
        %v546 = vrot.slane %v541, %v545
        %v547 = vadd.f32 %v546, 0.0
        %548 = vst [vmem:[%s485] sm:$0x1] %v547
        %v549 = vld [vmem:[%s3] sm:$0x3]
        %v550 = vld [vmem:[%s4] sm:$0xff]
        %v551 = vld [vmem:[%s4 + $0x8] sm:$0xff]
        %v552 = vld [vmem:[%s4 + $0x10] sm:$0xff]
        %v553 = vld [vmem:[%s4 + $0x18] sm:$0xff]
        %v554 = vld [vmem:[%s5] sm:$0x1]
        %v556 = vlaneseq
        %v557 = vshrl.u32 %v556, 7
        %v558 = vsub.s32 0, %v557
        %v559 = vrot.slane %v554, %v558
        %vm561 = vcmask 261120
        %v563 = vsel %vm561, %v549, 0
        %565 = vmatprep.subr.mxu0 0.0
        %566 = vmatpush1.msra.mxu0 0.0
        %567 = vmatprep.subr.mxu0 0.0
        %568 = vmatpush1.msra.mxu0 0.0
        %569 = vmatprep.subr.mxu0 0.0
        %570 = vmatpush1.msra.mxu0 0.0
        %571 = vmatprep.subr.mxu0 0.0
        %572 = vmatpush1.msra.mxu0 0.0
        %573 = vmatprep.subr.mxu0 0.0
        %574 = vmatpush1.msra.mxu0 0.0
        %575 = vmatprep.subr.mxu0 0.0
        %576 = vmatpush1.msra.mxu0 0.0
        %577 = vmatprep.subr.mxu0 0.0
        %578 = vmatpush1.msra.mxu0 0.0
        %579 = vmatprep.subr.mxu0 0.0
        %580 = vmatpush1.msra.mxu0 0.0
        %581 = vmatprep.subr.mxu0 0.0
        %582 = vmatpush1.msra.mxu0 0.0
        %583 = vmatprep.subr.mxu0 0.0
        %584 = vmatpush1.msra.mxu0 0.0
        %585 = vmatprep.subr.mxu0 0.0
        %586 = vmatpush1.msra.mxu0 0.0
        %587 = vmatprep.subr.mxu0 0.0
        %588 = vmatpush1.msra.mxu0 0.0
        %589 = vmatprep.subr.mxu0 0.0
        %590 = vmatpush1.msra.mxu0 %v553
        %591 = vmatprep.subr.mxu0 0.0
        %592 = vmatpush1.msra.mxu0 %v552
        %593 = vmatprep.subr.mxu0 0.0
        %594 = vmatpush1.msra.mxu0 %v551
        %595 = vmatprep.subr.mxu0 0.0
        %596 = vmatpush1.msra.mxu0 %v550
        %597 = vmatprep.subr.mxu0 0.0
        %598 = vmatpush2.msra.mxu0 0.0
        %599 = vmatprep.subr.mxu0 0.0
        %600 = vmatpush2.msra.mxu0 0.0
        %601 = vmatprep.subr.mxu0 0.0
        %602 = vmatpush2.msra.mxu0 0.0
        %603 = vmatprep.subr.mxu0 0.0
        %604 = vmatpush2.msra.mxu0 0.0
        %605 = vmatprep.subr.mxu0 0.0
        %606 = vmatpush2.msra.mxu0 0.0
        %607 = vmatprep.subr.mxu0 0.0
        %608 = vmatpush2.msra.mxu0 0.0
        %609 = vmatprep.subr.mxu0 0.0
        %610 = vmatpush2.msra.mxu0 0.0
        %611 = vmatprep.subr.mxu0 0.0
        %612 = vmatpush2.msra.mxu0 0.0
        %613 = vmatprep.subr.mxu0 0.0
        %614 = vmatpush2.msra.mxu0 0.0
        %615 = vmatprep.subr.mxu0 0.0
        %616 = vmatpush2.msra.mxu0 0.0
        %617 = vmatprep.subr.mxu0 0.0
        %618 = vmatpush2.msra.mxu0 0.0
        %619 = vmatprep.subr.mxu0 0.0
        %620 = vmatpush2.msra.mxu0 0.0
        %621 = vmatprep.subr.mxu0 0.0
        %622 = vmatpush2.msra.mxu0 0.0
        %623 = vmatprep.subr.mxu0 0.0
        %624 = vmatpush2.msra.mxu0 0.0
        %625 = vmatprep.subr.mxu0 0.0
        %626 = vmatpush2.msra.mxu0 0.0
        %627 = vmatprep.subr.mxu0 0.0
        %628 = vmatpush2.msra.mxu0 0.0
        %629 = vmatprep.mubr.f32.mxu0 0.0
        %630 = vmatmul.mubr.f32.gmra.mxu0 %v563
        %v631 = vpop.f32.mrf.mxu0
        %v632 = vadd.f32 %v559, %v631
        %v633 = vpop.f32.mrf.mxu0
        %634 = vdwg.mxu0
        %v635 = vxor.u32 %v632, 2147483648
        %v636 = vmul.f32 %v635, 1.442695
        %v637 = vpow.pop %v636
        %v638 = vadd.f32 %v637, 1.0
        %v639 = vrcp.pop %v638
        %v640 = vmul.f32 1.0, %v639
        %v641 = vmul.f32 %v632, %v640
        %v642 = vld [vmem:[%s6] sm:$0xff]
        %v643 = vld [vmem:[%s6 + $0x8] sm:$0xff]
        %v644 = vld [vmem:[%s6 + $0x10] sm:$0xff]
        %v645 = vld [vmem:[%s6 + $0x18] sm:$0xff]
        %v646 = vld [vmem:[%s7] sm:$0x1]
        %v648 = vlaneseq
        %v649 = vshrl.u32 %v648, 7
        %v650 = vsub.s32 0, %v649
        %v651 = vrot.slane %v646, %v650
        %v654 = vsel %vm561, %v641, 0
        %656 = vmatprep.subr.mxu0 0.0
        %657 = vmatpush1.msra.mxu0 0.0
        %658 = vmatprep.subr.mxu0 0.0
        %659 = vmatpush1.msra.mxu0 0.0
        %660 = vmatprep.subr.mxu0 0.0
        %661 = vmatpush1.msra.mxu0 0.0
        %662 = vmatprep.subr.mxu0 0.0
        %663 = vmatpush1.msra.mxu0 0.0
        %664 = vmatprep.subr.mxu0 0.0
        %665 = vmatpush1.msra.mxu0 0.0
        %666 = vmatprep.subr.mxu0 0.0
        %667 = vmatpush1.msra.mxu0 0.0
        %668 = vmatprep.subr.mxu0 0.0
        %669 = vmatpush1.msra.mxu0 0.0
        %670 = vmatprep.subr.mxu0 0.0
        %671 = vmatpush1.msra.mxu0 0.0
        %672 = vmatprep.subr.mxu0 0.0
        %673 = vmatpush1.msra.mxu0 0.0
        %674 = vmatprep.subr.mxu0 0.0
        %675 = vmatpush1.msra.mxu0 0.0
        %676 = vmatprep.subr.mxu0 0.0
        %677 = vmatpush1.msra.mxu0 0.0
        %678 = vmatprep.subr.mxu0 0.0
        %679 = vmatpush1.msra.mxu0 0.0
        %680 = vmatprep.subr.mxu0 0.0
        %681 = vmatpush1.msra.mxu0 %v645
        %682 = vmatprep.subr.mxu0 0.0
        %683 = vmatpush1.msra.mxu0 %v644
        %684 = vmatprep.subr.mxu0 0.0
        %685 = vmatpush1.msra.mxu0 %v643
        %686 = vmatprep.subr.mxu0 0.0
        %687 = vmatpush1.msra.mxu0 %v642
        %688 = vmatprep.subr.mxu0 0.0
        %689 = vmatpush2.msra.mxu0 0.0
        %690 = vmatprep.subr.mxu0 0.0
        %691 = vmatpush2.msra.mxu0 0.0
        %692 = vmatprep.subr.mxu0 0.0
        %693 = vmatpush2.msra.mxu0 0.0
        %694 = vmatprep.subr.mxu0 0.0
        %695 = vmatpush2.msra.mxu0 0.0
        %696 = vmatprep.subr.mxu0 0.0
        %697 = vmatpush2.msra.mxu0 0.0
        %698 = vmatprep.subr.mxu0 0.0
        %699 = vmatpush2.msra.mxu0 0.0
        %700 = vmatprep.subr.mxu0 0.0
        %701 = vmatpush2.msra.mxu0 0.0
        %702 = vmatprep.subr.mxu0 0.0
        %703 = vmatpush2.msra.mxu0 0.0
        %704 = vmatprep.subr.mxu0 0.0
        %705 = vmatpush2.msra.mxu0 0.0
        %706 = vmatprep.subr.mxu0 0.0
        %707 = vmatpush2.msra.mxu0 0.0
        %708 = vmatprep.subr.mxu0 0.0
        %709 = vmatpush2.msra.mxu0 0.0
        %710 = vmatprep.subr.mxu0 0.0
        %711 = vmatpush2.msra.mxu0 0.0
        %712 = vmatprep.subr.mxu0 0.0
        %713 = vmatpush2.msra.mxu0 0.0
        %714 = vmatprep.subr.mxu0 0.0
        %715 = vmatpush2.msra.mxu0 0.0
        %716 = vmatprep.subr.mxu0 0.0
        %717 = vmatpush2.msra.mxu0 0.0
        %718 = vmatprep.subr.mxu0 0.0
        %719 = vmatpush2.msra.mxu0 0.0
        %720 = vmatprep.mubr.f32.mxu0 0.0
        %721 = vmatmul.mubr.f32.gmra.mxu0 %v654
        %v722 = vpop.f32.mrf.mxu0
        %v723 = vadd.f32 %v651, %v722
        %v724 = vpop.f32.mrf.mxu0
        %725 = vdwg.mxu0
        %vm726 = vcmask 254976
        %v727 = vsel %vm726, %v723, -inf
        %728 = vmax.xlane.f32.xlu0 %v727
        %v729 = vpop.xlane.xlu0 %728
        %v730 = vsub.f32 %v723, %v729
        %v731 = vmul.f32 %v730, 1.442695
        %v732 = vpow.pop %v731
        %v733 = vsel %vm726, %v732, 0.0
        %734 = vadd.xlane.f32.xlu0 %v733
        %v735 = vpop.xlane.xlu0 %734
        %v736 = vlog2.pop %v735
        %v737 = vmul.f32 %v736, 0.6931472
        %v738 = vadd.f32 %v729, %v737
        %v739 = vld [vmem:[%s8] sm:$0x3]
        %v740 = vmul.f32 %v739, %v723
        %v741 = vsel %vm726, %v740, 0.0
        %742 = vadd.xlane.f32.xlu0 %v741
        %v743 = vpop.xlane.xlu0 %742
        %v744 = vsub.f32 %v738, %v743
        %vm745 = vcmask 1041408
        %v746 = vsel %vm745, %v744, 0.0
        %v747 = vrot.slane %v746, 4
        %v748 = vadd.f32 %v746, %v747
        %v749 = vrot.slane %v748, 2
        %v750 = vadd.f32 %v748, %v749
        %v751 = vrot.slane %v750, 1
        %v752 = vadd.f32 %v750, %v751
        %v753 = vrcp.pop 2.0
        %v754 = vmul.f32 %v752, %v753
        %v755 = vadd.f32 %v754, 0.0
        %756 = vst [vmem:[%s488] sm:$0x1] %v755
      $region64: #{geossl_pdm_forward.1} parent=55 // pred_fallthru
        _
      %p757 = scmp.lt.s32.totalorder %s26, 1
      %s758 = scalar_select %p757, %s26, 1
      %s759 = scalar_lea.vmem %s9, %s758
      %p760 = scmp.lt.s32.totalorder %s26, 1
      %s761 = scalar_select %p760, %s26, 1
      %s762 = scalar_lea.vmem %s10, %s761
      // Predicated region
      $region65: #{geossl_pdm_forward.1} parent=55 // pred_check
        %p763 = pneg %p280
      $region66: #{geossl_pdm_forward.1} parent=55 // pred_check_branch
        %765 = sbr.rel (%p763) target = $region68
      $region67: #{geossl_pdm_forward.1} parent=55 // pred_region
        _
      $region68: #{geossl_pdm_forward.1} parent=55 // pred_fallthru
        _
      // Predicated region
      $region69: #{geossl_pdm_forward.1} parent=55 // pred_check
        %p766 = pneg %p306
      $region70: #{geossl_pdm_forward.1} parent=55 // pred_check_branch
        %768 = sbr.rel (%p766) target = $region72
      $region71: #{geossl_pdm_forward.1} parent=55 // pred_region
        _
      $region72: #{geossl_pdm_forward.1} parent=55 // pred_fallthru
        _
    $region56: #{geossl_pdm_forward.1} parent=5 // pred_fallthru
      _
    %p769 = scmp.le.s32.totalorder 2, %s17
    // Predicated region
    $region73: #{geossl_pdm_forward.1} parent=5 // pred_check
      %p770 = pneg %p769
    $region74: #{geossl_pdm_forward.1} parent=5 // pred_check_branch
      %772 = sbr.rel (%p770) target = $region76
    $region75: #{geossl_pdm_forward.1} parent=5 // pred_region
      %s773 = ssub.s32 %s17, 2
      // Predicated region
      $region77: #{geossl_pdm_forward.1} parent=75 // pred_check
        %p774 = pneg %p286
      $region78: #{geossl_pdm_forward.1} parent=75 // pred_check_branch
        %776 = sbr.rel (%p774) target = $region80
      $region79: #{geossl_pdm_forward.1} parent=75 // pred_region
        %p777 = scmp.lt.s32.totalorder %s28, 1
        %s778 = scalar_select %p777, %s28, 1
        %s779 = scalar_lea.vmem %s9, %s778
      $region80: #{geossl_pdm_forward.1} parent=75 // pred_fallthru
        _
      // Predicated region
      $region81: #{geossl_pdm_forward.1} parent=75 // pred_check
        %p780 = pneg %p312
      $region82: #{geossl_pdm_forward.1} parent=75 // pred_check_branch
        %782 = sbr.rel (%p780) target = $region84
      $region83: #{geossl_pdm_forward.1} parent=75 // pred_region
        %p783 = scmp.lt.s32.totalorder %s28, 1
        %s784 = scalar_select %p783, %s28, 1
        %s785 = scalar_lea.vmem %s10, %s784
      $region84: #{geossl_pdm_forward.1} parent=75 // pred_fallthru
        _
    $region76: #{geossl_pdm_forward.1} parent=5 // pred_fallthru
      _
  $region6: #{geossl_pdm_forward.1} parent=0 // loop_footer
    %s21 = sadd.s32 1, %s17
  $region7: #{geossl_pdm_forward.1} parent=0 // loop_footer_branch
    %16 = sbr.rel target = $region3
  $region8: #{geossl_pdm_forward.1} parent=0 // loop_exit
    _

</llo_original>
